<compile_context>
chip_gen: v6e
topology: v6e:2x2x1
jax: 0.10.0
libtpu: 0.0.40
codegen_flags: <defaults>
</compile_context>

<pallas_src>
import functools

import jax
import jax.numpy as jnp
from jax.experimental import pallas as pl
from jax.experimental.pallas import tpu as pltpu


# ----------------------------------------------------------------------------
# Pallas kernel: fused MaxPool2d(2) + DoubleConv (conv3x3 + BN + ReLU, twice)
# ----------------------------------------------------------------------------
def _conv3x3_banded(src, w_ref, not_first, not_last):
    """SAME 3x3 conv of a (rows, Wp*Ci) slab -> (rows, Wp*Co), rows = B*Hp.

    w_ref[dy] is a column-banded (Wp*Ci, Wp*Co) matrix that folds the three dx
    taps and the width zero-padding, so the whole conv is 3 MXU matmuls with the
    batch folded into M.  The height halo (rows h-1 / h+1, zero-padded, never
    bleeding across the batch seam) is applied with a sublane roll + row mask.
    """
    rows = src.shape[0]
    p0 = jnp.dot(src, w_ref[0], preferred_element_type=jnp.float32)   # dy = 0
    p1 = jnp.dot(src, w_ref[1], preferred_element_type=jnp.float32)   # dy = 1
    p2 = jnp.dot(src, w_ref[2], preferred_element_type=jnp.float32)   # dy = 2
    up = jnp.where(not_first, pltpu.roll(p0, 1, 0), 0.0)          # takes row h-1
    dn = jnp.where(not_last, pltpu.roll(p2, rows - 1, 0), 0.0)    # takes row h+1
    return p1 + up + dn


def _down_kernel(x_ref, w1_ref, b1_ref, w2_ref, b2_ref, o_ref, *, B, Hp):
    # x_ref : (4, B*Hp, Wp*Cin)     bf16  2x2-pool parity planes (rp*2 + cp)
    # w1_ref: (3, Wp*Cin, Wp*Cmid)  bf16  banded conv1 weights, BN1 scale folded
    # b1_ref: (1, Wp*Cmid)          f32   folded BN1 bias, tiled over w
    # w2_ref: (3, Wp*Cmid, Wp*Cout) bf16  banded conv2 weights, BN2 scale folded
    # b2_ref: (1, Wp*Cout)          f32
    # o_ref : (B*Hp, Wp*Cout)       lane-dense output (one aligned full vst)
    rows = B * Hp

    # -- MaxPool2d(2): pure VPU max over the four parity planes ---------------
    pooled = jnp.maximum(jnp.maximum(x_ref[0], x_ref[1]),
                         jnp.maximum(x_ref[2], x_ref[3]))      # (B*Hp, Wp*Cin)

    # -- per-batch first/last-row masks (height zero-halo, no batch bleed) ----
    row = jax.lax.broadcasted_iota(jnp.int32, (rows, 1), 0)
    not_first = row != 0
    not_last = row != Hp - 1
    for b in range(1, B):                                      # static unroll
        not_first = not_first & (row != b * Hp)
        not_last = not_last & (row != (b + 1) * Hp - 1)

    # -- conv1 (+ folded BN1 scale) + bias + ReLU, bf16 into the second MXU ---
    h = _conv3x3_banded(pooled, w1_ref, not_first, not_last)
    h = jnp.maximum(h + b1_ref[...], 0.0).astype(jnp.bfloat16)

    # -- conv2 (+ folded BN2 scale) + bias + ReLU, straight to the output -----
    o = _conv3x3_banded(h, w2_ref, not_first, not_last)
    o_ref[...] = jnp.maximum(o + b2_ref[...], 0.0).astype(o_ref.dtype)


# ----------------------------------------------------------------------------
# One-time parameter preparation (kept OUT of the per-call path)
# ----------------------------------------------------------------------------
def fold_bn(gamma, beta, mean, var, eps=1e-5):
    scale = gamma / jnp.sqrt(var + eps)
    bias = beta - mean * scale
    return scale, bias


def band_conv_weights(w_hwio, Wp):
    """(3,3,Ci,Co) conv weights -> (3, Wp*Ci, Wp*Co) column-banded matrices.

    Wb[dy, s*Ci + k, w*Co + c] = w[dy, s - w + 1, k, c] if 0 <= s - w + 1 < 3
    else 0: folds the three dx taps and the width-direction zero padding so
    each kernel row dy is one lane-dense MXU matmul.
    """
    KH, KW, Ci, Co = w_hwio.shape
    s_idx = jnp.arange(Wp)
    w_idx = jnp.arange(Wp)
    dx_idx = jnp.arange(KW)
    mask = (s_idx[None, :, None] ==
            (w_idx[None, None, :] + dx_idx[:, None, None] - 1)).astype(jnp.float32)
    wb = jnp.einsum("dxkc,xsw->dskwc", w_hwio.astype(jnp.float32), mask)
    return wb.reshape(KH, Wp * Ci, Wp * Co)


def prepare_down_params(params, W):
    """Fold BN scale into the conv weights, band + cast to bf16, tile biases."""
    Wp = W // 2
    w1, w2 = params["w1"], params["w2"]
    Cmid, Cout = w1.shape[-1], w2.shape[-1]
    s1, b1 = fold_bn(*params["bn1"])
    s2, b2 = fold_bn(*params["bn2"])
    w1b = band_conv_weights(w1 * s1[None, None, None, :], Wp).astype(jnp.bfloat16)
    w2b = band_conv_weights(w2 * s2[None, None, None, :], Wp).astype(jnp.bfloat16)
    b1t = jnp.tile(b1, Wp).reshape(1, Wp * Cmid).astype(jnp.float32)
    b2t = jnp.tile(b2, Wp).reshape(1, Wp * Cout).astype(jnp.float32)
    return {"w1b": w1b, "b1t": b1t, "w2b": w2b, "b2t": b2t}


# ----------------------------------------------------------------------------
# Forward wrapper
# ----------------------------------------------------------------------------
def down_pallas(prep, x_nchw):
    """Down.forward(x): MaxPool2d(2) + DoubleConv, fused in one pallas_call."""
    B, Cin, H, W = x_nchw.shape
    Hp, Wp = H // 2, W // 2            # TODO(synk): odd H/W (floor) unhandled
    Cout = prep["w2b"].shape[-1] // Wp

    # NCHW -> (parity, B*Hp, Wp*Cin) pool-ready planes in ONE transpose; the
    # pool, halos and both convs all happen inside the kernel.  bf16 halves the
    # activation DMA bytes.  (Keeping the model NHWC end-to-end would delete
    # both wrapper transposes entirely.)
    xr = x_nchw.reshape(B, Cin, Hp, 2, Wp, 2)
    xr = jnp.transpose(xr, (3, 5, 0, 2, 4, 1))         # (rp, cp, B, Hp, Wp, Cin)
    xr = xr.reshape(4, B * Hp, Wp * Cin).astype(jnp.bfloat16)

    kernel = functools.partial(_down_kernel, B=B, Hp=Hp)
    vmem = pl.BlockSpec(memory_space=pltpu.MemorySpace.VMEM)
    out2d = pl.pallas_call(
        kernel,
        out_shape=jax.ShapeDtypeStruct((B * Hp, Wp * Cout), x_nchw.dtype),
        in_specs=[vmem, vmem, vmem, vmem, vmem],
        out_specs=vmem,
    )(xr, prep["w1b"], prep["b1t"], prep["w2b"], prep["b2t"])

    # lane-dense (B*Hp, Wp*Cout) -> NCHW
    out = out2d.reshape(B, Hp, Wp, Cout)
    return jnp.transpose(out, (0, 3, 1, 2))


# ----------------------------------------------------------------------------
# Pure-JAX reference (mirrors the PyTorch module semantics, f32)
# ----------------------------------------------------------------------------
def down_forward_ref(params, x_nchw):
    x = jnp.transpose(x_nchw, (0, 2, 3, 1))
    B, H, W, C = x.shape
    xp = x.reshape(B, H // 2, 2, W // 2, 2, C).max(axis=(2, 4))
    s1, b1 = fold_bn(*params["bn1"])
    s2, b2 = fold_bn(*params["bn2"])

    def conv_bn_relu(t, w, s, b):
        y = jax.lax.conv_general_dilated(
            t, w, window_strides=(1, 1), padding="SAME",
            dimension_numbers=("NHWC", "HWIO", "NHWC"))
        return jnp.maximum(y * s[None, None, None, :] + b[None, None, None, :], 0.0)

    h = conv_bn_relu(xp, params["w1"], s1, b1)
    o = conv_bn_relu(h, params["w2"], s2, b2)
    return jnp.transpose(o, (0, 3, 1, 2))


# ----------------------------------------------------------------------------
# Main
# ----------------------------------------------------------------------------
if __name__ == "__main__":
    # Down(in_channels=8, out_channels=16): x (B, 8, 16, 16) -> (B, 16, 8, 8)
    B, Cin, Cout = 2, 8, 16
    Cmid = Cout                  # DoubleConv default: mid_channels = out_channels
    H = W = 16

    key = jax.random.PRNGKey(0)
    k = iter(jax.random.split(key, 12))

    x = jax.random.normal(next(k), (B, Cin, H, W), jnp.float32)

    params = {
        # conv weights in HWIO layout, no bias (matches Conv2d(..., bias=False))
        "w1": 0.1 * jax.random.normal(next(k), (3, 3, Cin, Cmid), jnp.float32),
        "w2": 0.1 * jax.random.normal(next(k), (3, 3, Cmid, Cout), jnp.float32),
        # BatchNorm (eval mode): gamma, beta, running_mean, running_var
        "bn1": (1.0 + 0.1 * jax.random.normal(next(k), (Cmid,), jnp.float32),
                0.1 * jax.random.normal(next(k), (Cmid,), jnp.float32),
                0.1 * jax.random.normal(next(k), (Cmid,), jnp.float32),
                0.5 + jax.random.uniform(next(k), (Cmid,), jnp.float32)),
        "bn2": (1.0 + 0.1 * jax.random.normal(next(k), (Cout,), jnp.float32),
                0.1 * jax.random.normal(next(k), (Cout,), jnp.float32),
                0.1 * jax.random.normal(next(k), (Cout,), jnp.float32),
                0.5 + jax.random.uniform(next(k), (Cout,), jnp.float32)),
    }

    prep = jax.block_until_ready(prepare_down_params(params, W))  # one-time prep

    out = jax.block_until_ready(jax.jit(down_pallas)(prep, x))
    ref = jax.block_until_ready(jax.jit(down_forward_ref)(params, x))

    assert out.shape == (B, Cout, H // 2, W // 2), out.shape
    max_err = float(jnp.max(jnp.abs(out - ref)))
    # bf16 MXU inputs (activations + weights) => looser tolerance than pure f32
    assert jnp.allclose(out, ref, rtol=2e-2, atol=2e-2), max_err

    print("KERNEL_OK")
</pallas_src>

<mosaic_0001>
module attributes {stable_mosaic.version = 11 : i64} {
  func.func @_down_kernel(%arg0: memref<4x16x64xbf16, #tpu.memory_space<vmem>>, %arg1: memref<3x64x128xbf16, #tpu.memory_space<vmem>>, %arg2: memref<1x128xf32, #tpu.memory_space<vmem>>, %arg3: memref<3x128x128xbf16, #tpu.memory_space<vmem>>, %arg4: memref<1x128xf32, #tpu.memory_space<vmem>>, %arg5: memref<16x128xf32, #tpu.memory_space<vmem>>) attributes {dimension_semantics = [], scalar_prefetch = 0 : i64, scratch_operands = 0 : i64, tpu.core_type = #tpu.core_type<tc>} {
    %c0 = arith.constant 0 : index
    %c0_0 = arith.constant 0 : index
    %c0_1 = arith.constant 0 : index
    %0 = vector.load %arg0[%c0, %c0_0, %c0_1] : memref<4x16x64xbf16, #tpu.memory_space<vmem>>, vector<1x16x64xbf16>
    %1 = vector.shape_cast %0 : vector<1x16x64xbf16> to vector<16x64xbf16>
    %c1 = arith.constant 1 : index
    %c0_2 = arith.constant 0 : index
    %c0_3 = arith.constant 0 : index
    %2 = vector.load %arg0[%c1, %c0_2, %c0_3] : memref<4x16x64xbf16, #tpu.memory_space<vmem>>, vector<1x16x64xbf16>
    %3 = vector.shape_cast %2 : vector<1x16x64xbf16> to vector<16x64xbf16>
    %4 = arith.maximumf %1, %3 : vector<16x64xbf16>
    %c2 = arith.constant 2 : index
    %c0_4 = arith.constant 0 : index
    %c0_5 = arith.constant 0 : index
    %5 = vector.load %arg0[%c2, %c0_4, %c0_5] : memref<4x16x64xbf16, #tpu.memory_space<vmem>>, vector<1x16x64xbf16>
    %6 = vector.shape_cast %5 : vector<1x16x64xbf16> to vector<16x64xbf16>
    %c3 = arith.constant 3 : index
    %c0_6 = arith.constant 0 : index
    %c0_7 = arith.constant 0 : index
    %7 = vector.load %arg0[%c3, %c0_6, %c0_7] : memref<4x16x64xbf16, #tpu.memory_space<vmem>>, vector<1x16x64xbf16>
    %8 = vector.shape_cast %7 : vector<1x16x64xbf16> to vector<16x64xbf16>
    %9 = arith.maximumf %6, %8 : vector<16x64xbf16>
    %10 = arith.maximumf %4, %9 : vector<16x64xbf16>
    %11 = tpu.iota {dimensions = array<i32: 0>} : vector<16x1xi32>
    %c0_i32 = arith.constant 0 : i32
    %12 = vector.broadcast %c0_i32 : i32 to vector<16x1xi32>
    %13 = arith.cmpi ne, %11, %12 : vector<16x1xi32>
    %c7_i32 = arith.constant 7 : i32
    %14 = vector.broadcast %c7_i32 : i32 to vector<16x1xi32>
    %15 = arith.cmpi ne, %11, %14 : vector<16x1xi32>
    %c8_i32 = arith.constant 8 : i32
    %16 = vector.broadcast %c8_i32 : i32 to vector<16x1xi32>
    %17 = arith.cmpi ne, %11, %16 : vector<16x1xi32>
    %18 = arith.andi %13, %17 : vector<16x1xi1>
    %c15_i32 = arith.constant 15 : i32
    %19 = vector.broadcast %c15_i32 : i32 to vector<16x1xi32>
    %20 = arith.cmpi ne, %11, %19 : vector<16x1xi32>
    %21 = arith.andi %15, %20 : vector<16x1xi1>
    %c0_8 = arith.constant 0 : index
    %c0_9 = arith.constant 0 : index
    %c0_10 = arith.constant 0 : index
    %22 = vector.load %arg1[%c0_8, %c0_9, %c0_10] : memref<3x64x128xbf16, #tpu.memory_space<vmem>>, vector<1x64x128xbf16>
    %23 = vector.shape_cast %22 : vector<1x64x128xbf16> to vector<64x128xbf16>
    %cst = arith.constant dense<0.000000e+00> : vector<16x128xf32>
    %24 = tpu.matmul %10, %23, %cst {dimension_numbers = #tpu.dot_dimension_numbers<[1], [0], [0], [1], [0, 0, 1, 1], [], []>} : vector<16x64xbf16>, vector<64x128xbf16>, vector<16x128xf32> -> vector<16x128xf32>
    %c1_11 = arith.constant 1 : index
    %c0_12 = arith.constant 0 : index
    %c0_13 = arith.constant 0 : index
    %25 = vector.load %arg1[%c1_11, %c0_12, %c0_13] : memref<3x64x128xbf16, #tpu.memory_space<vmem>>, vector<1x64x128xbf16>
    %26 = vector.shape_cast %25 : vector<1x64x128xbf16> to vector<64x128xbf16>
    %cst_14 = arith.constant dense<0.000000e+00> : vector<16x128xf32>
    %27 = tpu.matmul %10, %26, %cst_14 {dimension_numbers = #tpu.dot_dimension_numbers<[1], [0], [0], [1], [0, 0, 1, 1], [], []>} : vector<16x64xbf16>, vector<64x128xbf16>, vector<16x128xf32> -> vector<16x128xf32>
    %c2_15 = arith.constant 2 : index
    %c0_16 = arith.constant 0 : index
    %c0_17 = arith.constant 0 : index
    %28 = vector.load %arg1[%c2_15, %c0_16, %c0_17] : memref<3x64x128xbf16, #tpu.memory_space<vmem>>, vector<1x64x128xbf16>
    %29 = vector.shape_cast %28 : vector<1x64x128xbf16> to vector<64x128xbf16>
    %cst_18 = arith.constant dense<0.000000e+00> : vector<16x128xf32>
    %30 = tpu.matmul %10, %29, %cst_18 {dimension_numbers = #tpu.dot_dimension_numbers<[1], [0], [0], [1], [0, 0, 1, 1], [], []>} : vector<16x64xbf16>, vector<64x128xbf16>, vector<16x128xf32> -> vector<16x128xf32>
    %c1_i32 = arith.constant 1 : i32
    %31 = tpu.dynamic_rotate %24 by %c1_i32 dim 0 : vector<16x128xf32>, i32 -> vector<16x128xf32>
    %cst_19 = arith.constant 0.000000e+00 : f32
    %32 = vector.shape_cast %18 : vector<16x1xi1> to vector<16x1xi1>
    %33 = vector.broadcast %32 : vector<16x1xi1> to vector<16x128xi1>
    %34 = vector.broadcast %cst_19 : f32 to vector<16x128xf32>
    %35 = arith.select %33, %31, %34 : vector<16x128xi1>, vector<16x128xf32>
    %c15_i32_20 = arith.constant 15 : i32
    %36 = tpu.dynamic_rotate %30 by %c15_i32_20 dim 0 : vector<16x128xf32>, i32 -> vector<16x128xf32>
    %cst_21 = arith.constant 0.000000e+00 : f32
    %37 = vector.shape_cast %21 : vector<16x1xi1> to vector<16x1xi1>
    %38 = vector.broadcast %37 : vector<16x1xi1> to vector<16x128xi1>
    %39 = vector.broadcast %cst_21 : f32 to vector<16x128xf32>
    %40 = arith.select %38, %36, %39 : vector<16x128xi1>, vector<16x128xf32>
    %41 = arith.addf %27, %35 : vector<16x128xf32>
    %42 = arith.addf %41, %40 : vector<16x128xf32>
    %c0_22 = arith.constant 0 : index
    %c0_23 = arith.constant 0 : index
    %43 = vector.load %arg2[%c0_22, %c0_23] : memref<1x128xf32, #tpu.memory_space<vmem>>, vector<1x128xf32>
    %44 = vector.broadcast %43 : vector<1x128xf32> to vector<16x128xf32>
    %45 = arith.addf %42, %44 : vector<16x128xf32>
    %cst_24 = arith.constant 0.000000e+00 : f32
    %46 = vector.broadcast %cst_24 : f32 to vector<16x128xf32>
    %47 = arith.maximumf %45, %46 : vector<16x128xf32>
    %48 = arith.truncf %47 : vector<16x128xf32> to vector<16x128xbf16>
    %c0_25 = arith.constant 0 : index
    %c0_26 = arith.constant 0 : index
    %c0_27 = arith.constant 0 : index
    %49 = vector.load %arg3[%c0_25, %c0_26, %c0_27] : memref<3x128x128xbf16, #tpu.memory_space<vmem>>, vector<1x128x128xbf16>
    %50 = vector.shape_cast %49 : vector<1x128x128xbf16> to vector<128x128xbf16>
    %cst_28 = arith.constant dense<0.000000e+00> : vector<16x128xf32>
    %51 = tpu.matmul %48, %50, %cst_28 {dimension_numbers = #tpu.dot_dimension_numbers<[1], [0], [0], [1], [0, 0, 1, 1], [], []>} : vector<16x128xbf16>, vector<128x128xbf16>, vector<16x128xf32> -> vector<16x128xf32>
    %c1_29 = arith.constant 1 : index
    %c0_30 = arith.constant 0 : index
    %c0_31 = arith.constant 0 : index
    %52 = vector.load %arg3[%c1_29, %c0_30, %c0_31] : memref<3x128x128xbf16, #tpu.memory_space<vmem>>, vector<1x128x128xbf16>
    %53 = vector.shape_cast %52 : vector<1x128x128xbf16> to vector<128x128xbf16>
    %cst_32 = arith.constant dense<0.000000e+00> : vector<16x128xf32>
    %54 = tpu.matmul %48, %53, %cst_32 {dimension_numbers = #tpu.dot_dimension_numbers<[1], [0], [0], [1], [0, 0, 1, 1], [], []>} : vector<16x128xbf16>, vector<128x128xbf16>, vector<16x128xf32> -> vector<16x128xf32>
    %c2_33 = arith.constant 2 : index
    %c0_34 = arith.constant 0 : index
    %c0_35 = arith.constant 0 : index
    %55 = vector.load %arg3[%c2_33, %c0_34, %c0_35] : memref<3x128x128xbf16, #tpu.memory_space<vmem>>, vector<1x128x128xbf16>
    %56 = vector.shape_cast %55 : vector<1x128x128xbf16> to vector<128x128xbf16>
    %cst_36 = arith.constant dense<0.000000e+00> : vector<16x128xf32>
    %57 = tpu.matmul %48, %56, %cst_36 {dimension_numbers = #tpu.dot_dimension_numbers<[1], [0], [0], [1], [0, 0, 1, 1], [], []>} : vector<16x128xbf16>, vector<128x128xbf16>, vector<16x128xf32> -> vector<16x128xf32>
    %c1_i32_37 = arith.constant 1 : i32
    %58 = tpu.dynamic_rotate %51 by %c1_i32_37 dim 0 : vector<16x128xf32>, i32 -> vector<16x128xf32>
    %cst_38 = arith.constant 0.000000e+00 : f32
    %59 = vector.shape_cast %18 : vector<16x1xi1> to vector<16x1xi1>
    %60 = vector.broadcast %59 : vector<16x1xi1> to vector<16x128xi1>
    %61 = vector.broadcast %cst_38 : f32 to vector<16x128xf32>
    %62 = arith.select %60, %58, %61 : vector<16x128xi1>, vector<16x128xf32>
    %c15_i32_39 = arith.constant 15 : i32
    %63 = tpu.dynamic_rotate %57 by %c15_i32_39 dim 0 : vector<16x128xf32>, i32 -> vector<16x128xf32>
    %cst_40 = arith.constant 0.000000e+00 : f32
    %64 = vector.shape_cast %21 : vector<16x1xi1> to vector<16x1xi1>
    %65 = vector.broadcast %64 : vector<16x1xi1> to vector<16x128xi1>
    %66 = vector.broadcast %cst_40 : f32 to vector<16x128xf32>
    %67 = arith.select %65, %63, %66 : vector<16x128xi1>, vector<16x128xf32>
    %68 = arith.addf %54, %62 : vector<16x128xf32>
    %69 = arith.addf %68, %67 : vector<16x128xf32>
    %c0_41 = arith.constant 0 : index
    %c0_42 = arith.constant 0 : index
    %70 = vector.load %arg4[%c0_41, %c0_42] : memref<1x128xf32, #tpu.memory_space<vmem>>, vector<1x128xf32>
    %71 = vector.broadcast %70 : vector<1x128xf32> to vector<16x128xf32>
    %72 = arith.addf %69, %71 : vector<16x128xf32>
    %cst_43 = arith.constant 0.000000e+00 : f32
    %73 = vector.broadcast %cst_43 : f32 to vector<16x128xf32>
    %74 = arith.maximumf %72, %73 : vector<16x128xf32>
    %c0_44 = arith.constant 0 : index
    %c0_45 = arith.constant 0 : index
    %75 = vector.load %arg5[%c0_44, %c0_45] : memref<16x128xf32, #tpu.memory_space<vmem>>, vector<16x128xf32>
    tpu.vector_store %arg5[%c0_44, %c0_45], %74 {strides = array<i32>} : memref<16x128xf32, #tpu.memory_space<vmem>>, vector<16x128xf32>,
    return
  }
}

</mosaic_0001>

<llo_original>
// kernel: down_pallas.1
$region0: #{down_pallas.1}
  #allocation0 [shape = 'u32[]', space=smem, size = 0x4, offset = 0x4, fixed_abs, tag = 'smem constant byte address 0x4 - core index']
  #allocation1 [shape = 'u32[144,128]{1,0:T(1,128)}', space=vmem, size = 0x12000, scoped, tag = 'internal scratch']
  %s0 = inlined_call_operand.vmem [shape: bf16[4,16,64], index: 0, kind: input, shape index: {}]
  %s1 = inlined_call_operand.vmem [shape: bf16[3,64,128], index: 1, kind: input, shape index: {}]
  %s2 = inlined_call_operand.vmem [shape: f32[1,128], index: 2, kind: input, shape index: {}]
  %s3 = inlined_call_operand.vmem [shape: bf16[3,128,128], index: 3, kind: input, shape index: {}]
  %s4 = inlined_call_operand.vmem [shape: f32[1,128], index: 4, kind: input, shape index: {}]
  %s5 = inlined_call_operand.vmem [shape: f32[16,128], index: 5, kind: output, shape index: {}]
  %s6 = sld [smem:[#allocation0]]
  $region30: #{down_pallas.1} parent=0
    _
  %s8 = ssub.s32 1, %s6
  %s9 = scalar_select 0, %s8, %s6
  // Predicated region
  $region2: #{down_pallas.1} parent=0 // pred_check
    _
  $region3: #{down_pallas.1} parent=0 // pred_check_branch
    %11 = sbr.rel (0) target = $region5
  $region4: #{down_pallas.1} parent=0 // pred_region
    _
  $region5: #{down_pallas.1} parent=0 // pred_fallthru
    _
  // Predicated region
  $region6: #{down_pallas.1} parent=0 // pred_check
    _
  $region7: #{down_pallas.1} parent=0 // pred_check_branch
    %13 = sbr.rel (0) target = $region9
  $region8: #{down_pallas.1} parent=0 // pred_region
    _
  $region9: #{down_pallas.1} parent=0 // pred_fallthru
    _
  // Predicated region
  $region10: #{down_pallas.1} parent=0 // pred_check
    _
  $region11: #{down_pallas.1} parent=0 // pred_check_branch
    %15 = sbr.rel (0) target = $region13
  $region12: #{down_pallas.1} parent=0 // pred_region
    _
  $region13: #{down_pallas.1} parent=0 // pred_fallthru
    _
  // Predicated region
  $region14: #{down_pallas.1} parent=0 // pred_check
    _
  $region15: #{down_pallas.1} parent=0 // pred_check_branch
    %17 = sbr.rel (0) target = $region17
  $region16: #{down_pallas.1} parent=0 // pred_region
    _
  $region17: #{down_pallas.1} parent=0 // pred_fallthru
    _
  // Predicated region
  $region18: #{down_pallas.1} parent=0 // pred_check
    _
  $region19: #{down_pallas.1} parent=0 // pred_check_branch
    %19 = sbr.rel (0) target = $region21
  $region20: #{down_pallas.1} parent=0 // pred_region
    _
  $region21: #{down_pallas.1} parent=0 // pred_fallthru
    _
  %v21 = vld [vmem:[%s0] sm:$0xf]
  %v22 = vld [vmem:[%s0 + $0x4] sm:$0xf]
  %s23 = scalar_lea.vmem %s0, 8
  %v24 = vld [vmem:[%s23] sm:$0xf]
  %v25 = vld [vmem:[%s23 + $0x4] sm:$0xf]
  %v26 = vmax.bf16 %v21, %v24
  %v27 = vmax.bf16 %v22, %v25
  %s28 = scalar_lea.vmem %s0, 16
  %v29 = vld [vmem:[%s28] sm:$0xf]
  %v30 = vld [vmem:[%s28 + $0x4] sm:$0xf]
  %s31 = scalar_lea.vmem %s0, 24
  %v32 = vld [vmem:[%s31] sm:$0xf]
  %v33 = vld [vmem:[%s31 + $0x4] sm:$0xf]
  %v34 = vmax.bf16 %v29, %v32
  %v35 = vmax.bf16 %v30, %v33
  %v36 = vmax.bf16 %v26, %v34
  %v37 = vmax.bf16 %v27, %v35
  %v38 = vlaneseq
  %v39 = vshrl.u32 %v38, 7
  %v40 = vadd.s32 %v39, 8
  %vm41 = vcmp.ne.s32.totalorder %v39, 0
  %vm42 = vcmp.ne.s32.totalorder %v40, 0
  %vm43 = vcmp.ne.s32.totalorder %v39, 7
  %vm44 = vcmp.ne.s32.totalorder %v40, 7
  %vm45 = vcmp.ne.s32.totalorder %v39, 8
  %vm46 = vcmp.ne.s32.totalorder %v40, 8
  %vm47 = vmand %vm41, %vm45
  %vm48 = vmand %vm42, %vm46
  %vm49 = vcmp.ne.s32.totalorder %v39, 15
  %vm50 = vcmp.ne.s32.totalorder %v40, 15
  %vm51 = vmand %vm43, %vm49
  %vm52 = vmand %vm44, %vm50
  %v53 = vld [vmem:[%s1] sm:$0xf]
  %v54 = vld [vmem:[%s1 + $0x4] sm:$0xf]
  %v55 = vld [vmem:[%s1 + $0x8] sm:$0xf]
  %v56 = vld [vmem:[%s1 + $0xc] sm:$0xf]
  %v57 = vld [vmem:[%s1 + $0x10] sm:$0xf]
  %v58 = vld [vmem:[%s1 + $0x14] sm:$0xf]
  %v59 = vld [vmem:[%s1 + $0x18] sm:$0xf]
  %v60 = vld [vmem:[%s1 + $0x1c] sm:$0xf]
  %v63 = vunpack.c.l.b16 %v36
  %v64 = vunpack.c.l.b16 %v37
  %v65 = vpack.c.b16 %v64, %v63
  %v74 = vunpack.c.l.b16 %v53
  %v75 = vunpack.c.l.b16 %v54
  %v76 = vunpack.c.l.b16 %v55
  %v77 = vunpack.c.l.b16 %v56
  %v78 = vunpack.c.l.b16 %v57
  %v79 = vunpack.c.l.b16 %v58
  %v80 = vunpack.c.l.b16 %v59
  %v81 = vunpack.c.l.b16 %v60
  %v82 = vpack.c.b16 %v75, %v74
  %v83 = vpack.c.b16 %v77, %v76
  %v84 = vpack.c.b16 %v79, %v78
  %v85 = vpack.c.b16 %v81, %v80
  %vm90 = vcmask 523264
  %v92 = vsel %vm90, %v65, 0
  %94 = vmatprep.subr.bf16.mxu0 0
  %95 = vmatpush1.bf16.msra.mxu0 0
  %96 = vmatprep.subr.bf16.mxu0 0
  %97 = vmatpush1.bf16.msra.mxu0 0
  %98 = vmatprep.subr.bf16.mxu0 0
  %99 = vmatpush1.bf16.msra.mxu0 0
  %100 = vmatprep.subr.bf16.mxu0 0
  %101 = vmatpush1.bf16.msra.mxu0 0
  %102 = vmatprep.subr.bf16.mxu0 0
  %103 = vmatpush1.bf16.msra.mxu0 %v85
  %104 = vmatprep.subr.bf16.mxu0 0
  %105 = vmatpush1.bf16.msra.mxu0 %v84
  %106 = vmatprep.subr.bf16.mxu0 0
  %107 = vmatpush1.bf16.msra.mxu0 %v83
  %108 = vmatprep.subr.bf16.mxu0 0
  %109 = vmatpush1.bf16.msra.mxu0 %v82
  %110 = vmatprep.subr.bf16.mxu0 0
  %111 = vmatpush2.bf16.msra.mxu0 0
  %112 = vmatprep.subr.bf16.mxu0 0
  %113 = vmatpush2.bf16.msra.mxu0 0
  %114 = vmatprep.subr.bf16.mxu0 0
  %115 = vmatpush2.bf16.msra.mxu0 0
  %116 = vmatprep.subr.bf16.mxu0 0
  %117 = vmatpush2.bf16.msra.mxu0 0
  %118 = vmatprep.subr.bf16.mxu0 0
  %119 = vmatpush2.bf16.msra.mxu0 0
  %120 = vmatprep.subr.bf16.mxu0 0
  %121 = vmatpush2.bf16.msra.mxu0 0
  %122 = vmatprep.subr.bf16.mxu0 0
  %123 = vmatpush2.bf16.msra.mxu0 0
  %124 = vmatprep.subr.bf16.mxu0 0
  %125 = vmatpush2.bf16.msra.mxu0 0
  %126 = vmatprep.mubr.bf16.mxu0 0
  %127 = vmatmul.mubr.bf16.gmra.mxu0 %v92
  %v128 = vpop.f32.mrf.mxu0
  %v129 = vadd.f32 0.0, %v128
  %v130 = vpop.f32.mrf.mxu0
  %v131 = vpop.f32.mrf.mxu0
  %v132 = vadd.f32 0.0, %v131
  %v133 = vpop.f32.mrf.mxu0
  %134 = vdwg.mxu0
  %s135 = scalar_lea.vmem %s1, 32
  %v136 = vld [vmem:[%s135] sm:$0xf]
  %v137 = vld [vmem:[%s135 + $0x4] sm:$0xf]
  %v138 = vld [vmem:[%s135 + $0x8] sm:$0xf]
  %v139 = vld [vmem:[%s135 + $0xc] sm:$0xf]
  %v140 = vld [vmem:[%s135 + $0x10] sm:$0xf]
  %v141 = vld [vmem:[%s135 + $0x14] sm:$0xf]
  %v142 = vld [vmem:[%s135 + $0x18] sm:$0xf]
  %v143 = vld [vmem:[%s135 + $0x1c] sm:$0xf]
  %s144 = scalar_lea.vmem %s1, 64
  %v145 = vld [vmem:[%s144] sm:$0xf]
  %v146 = vld [vmem:[%s144 + $0x4] sm:$0xf]
  %v147 = vld [vmem:[%s144 + $0x8] sm:$0xf]
  %v148 = vld [vmem:[%s144 + $0xc] sm:$0xf]
  %v149 = vld [vmem:[%s144 + $0x10] sm:$0xf]
  %v150 = vld [vmem:[%s144 + $0x14] sm:$0xf]
  %v151 = vld [vmem:[%s144 + $0x18] sm:$0xf]
  %v152 = vld [vmem:[%s144 + $0x1c] sm:$0xf]
  %v161 = vunpack.c.l.b16 %v145
  %v162 = vunpack.c.l.b16 %v146
  %v163 = vunpack.c.l.b16 %v147
  %v164 = vunpack.c.l.b16 %v148
  %v165 = vunpack.c.l.b16 %v149
  %v166 = vunpack.c.l.b16 %v150
  %v167 = vunpack.c.l.b16 %v151
  %v168 = vunpack.c.l.b16 %v152
  %v169 = vpack.c.b16 %v162, %v161
  %v170 = vpack.c.b16 %v164, %v163
  %v171 = vpack.c.b16 %v166, %v165
  %v172 = vpack.c.b16 %v168, %v167
  %177 = vmatprep.subr.bf16.mxu0 0
  %178 = vmatpush1.bf16.msra.mxu0 0
  %179 = vmatprep.subr.bf16.mxu0 0
  %180 = vmatpush1.bf16.msra.mxu0 0
  %181 = vmatprep.subr.bf16.mxu0 0
  %182 = vmatpush1.bf16.msra.mxu0 0
  %183 = vmatprep.subr.bf16.mxu0 0
  %184 = vmatpush1.bf16.msra.mxu0 0
  %185 = vmatprep.subr.bf16.mxu0 0
  %186 = vmatpush1.bf16.msra.mxu0 %v172
  %187 = vmatprep.subr.bf16.mxu0 0
  %188 = vmatpush1.bf16.msra.mxu0 %v171
  %189 = vmatprep.subr.bf16.mxu0 0
  %190 = vmatpush1.bf16.msra.mxu0 %v170
  %191 = vmatprep.subr.bf16.mxu0 0
  %192 = vmatpush1.bf16.msra.mxu0 %v169
  %193 = vmatprep.subr.bf16.mxu0 0
  %194 = vmatpush2.bf16.msra.mxu0 0
  %195 = vmatprep.subr.bf16.mxu0 0
  %196 = vmatpush2.bf16.msra.mxu0 0
  %197 = vmatprep.subr.bf16.mxu0 0
  %198 = vmatpush2.bf16.msra.mxu0 0
  %199 = vmatprep.subr.bf16.mxu0 0
  %200 = vmatpush2.bf16.msra.mxu0 0
  %201 = vmatprep.subr.bf16.mxu0 0
  %202 = vmatpush2.bf16.msra.mxu0 0
  %203 = vmatprep.subr.bf16.mxu0 0
  %204 = vmatpush2.bf16.msra.mxu0 0
  %205 = vmatprep.subr.bf16.mxu0 0
  %206 = vmatpush2.bf16.msra.mxu0 0
  %207 = vmatprep.subr.bf16.mxu0 0
  %208 = vmatpush2.bf16.msra.mxu0 0
  %209 = vmatprep.mubr.bf16.mxu0 0
  %210 = vmatmul.mubr.bf16.gmra.mxu0 %v92
  %v211 = vpop.f32.mrf.mxu0
  %v212 = vadd.f32 0.0, %v211
  %v213 = vpop.f32.mrf.mxu0
  %v214 = vpop.f32.mrf.mxu0
  %v215 = vadd.f32 0.0, %v214
  %v216 = vpop.f32.mrf.mxu0
  %217 = vdwg.mxu0
  %v218 = vrot.slane %v129, 7
  %v219 = vrot.slane %v132, 7
  %vm220 = vcmp.lt.s32.totalorder %v39, 1
  %v221 = vsel %vm220, %v218, %v219
  %v222 = vsel %vm220, %v219, %v218
  %v223 = vsel %vm47, 1, 0
  %v224 = vsel %vm48, 1, 0
  %vm225 = vcmp.eq.s32.totalorder %v223, 1
  %vm226 = vcmp.eq.s32.totalorder %v224, 1
  %v227 = vsel %vm225, %v222, 0.0
  %v228 = vsel %vm226, %v221, 0.0
  %v229 = vrot.slane %v212, 1
  %v230 = vrot.slane %v215, 1
  %vm231 = vcmp.lt.s32.totalorder %v39, 7
  %v232 = vsel %vm231, %v229, %v230
  %v233 = vsel %vm231, %v230, %v229
  %v234 = vsel %vm51, 1, 0
  %v235 = vsel %vm52, 1, 0
  %vm236 = vcmp.eq.s32.totalorder %v234, 1
  %vm237 = vcmp.eq.s32.totalorder %v235, 1
  %v238 = vsel %vm236, %v232, 0.0
  %v239 = vsel %vm237, %v233, 0.0
  %v248 = vunpack.c.l.b16 %v136
  %v249 = vunpack.c.l.b16 %v137
  %v250 = vunpack.c.l.b16 %v138
  %v251 = vunpack.c.l.b16 %v139
  %v252 = vunpack.c.l.b16 %v140
  %v253 = vunpack.c.l.b16 %v141
  %v254 = vunpack.c.l.b16 %v142
  %v255 = vunpack.c.l.b16 %v143
  %v256 = vpack.c.b16 %v249, %v248
  %v257 = vpack.c.b16 %v251, %v250
  %v258 = vpack.c.b16 %v253, %v252
  %v259 = vpack.c.b16 %v255, %v254
  %264 = vmatprep.subr.bf16.mxu0 0
  %265 = vmatpush1.bf16.msra.mxu0 0
  %266 = vmatprep.subr.bf16.mxu0 0
  %267 = vmatpush1.bf16.msra.mxu0 0
  %268 = vmatprep.subr.bf16.mxu0 0
  %269 = vmatpush1.bf16.msra.mxu0 0
  %270 = vmatprep.subr.bf16.mxu0 0
  %271 = vmatpush1.bf16.msra.mxu0 0
  %272 = vmatprep.subr.bf16.mxu0 0
  %273 = vmatpush1.bf16.msra.mxu0 %v259
  %274 = vmatprep.subr.bf16.mxu0 0
  %275 = vmatpush1.bf16.msra.mxu0 %v258
  %276 = vmatprep.subr.bf16.mxu0 0
  %277 = vmatpush1.bf16.msra.mxu0 %v257
  %278 = vmatprep.subr.bf16.mxu0 0
  %279 = vmatpush1.bf16.msra.mxu0 %v256
  %280 = vmatprep.subr.bf16.mxu0 0
  %281 = vmatpush2.bf16.msra.mxu0 0
  %282 = vmatprep.subr.bf16.mxu0 0
  %283 = vmatpush2.bf16.msra.mxu0 0
  %284 = vmatprep.subr.bf16.mxu0 0
  %285 = vmatpush2.bf16.msra.mxu0 0
  %286 = vmatprep.subr.bf16.mxu0 0
  %287 = vmatpush2.bf16.msra.mxu0 0
  %288 = vmatprep.subr.bf16.mxu0 0
  %289 = vmatpush2.bf16.msra.mxu0 0
  %290 = vmatprep.subr.bf16.mxu0 0
  %291 = vmatpush2.bf16.msra.mxu0 0
  %292 = vmatprep.subr.bf16.mxu0 0
  %293 = vmatpush2.bf16.msra.mxu0 0
  %294 = vmatprep.subr.bf16.mxu0 0
  %295 = vmatpush2.bf16.msra.mxu0 0
  %296 = vmatprep.mubr.bf16.mxu0 0
  %297 = vmatmul.mubr.bf16.gmra.mxu0 %v92
  %v298 = vpop.f32.mrf.mxu0
  %v299 = vadd.f32 %v227, %v298
  %v300 = vpop.f32.mrf.mxu0
  %v301 = vpop.f32.mrf.mxu0
  %v302 = vadd.f32 %v228, %v301
  %v303 = vpop.f32.mrf.mxu0
  %304 = vdwg.mxu0
  %v305 = vadd.f32 %v299, %v238
  %v306 = vadd.f32 %v302, %v239
  %v307 = vld [vmem:[%s2] sm:$0x1]
  %v309 = vlaneseq
  %v310 = vshrl.u32 %v309, 7
  %v311 = vsub.s32 0, %v310
  %v312 = vrot.slane %v307, %v311
  %v314 = vadd.f32 %v305, %v312
  %v315 = vadd.f32 %v306, %v312
  %v316 = vmax.f32 %v314, 0.0
  %v317 = vmax.f32 %v315, 0.0
  %v318 = vpack.c.bf16 %v317, %v316
  %v319 = vld [vmem:[%s3] sm:$0xf]
  %v320 = vld [vmem:[%s3 + $0x4] sm:$0xf]
  %v321 = vld [vmem:[%s3 + $0x8] sm:$0xf]
  %v322 = vld [vmem:[%s3 + $0xc] sm:$0xf]
  %v323 = vld [vmem:[%s3 + $0x10] sm:$0xf]
  %v324 = vld [vmem:[%s3 + $0x14] sm:$0xf]
  %v325 = vld [vmem:[%s3 + $0x18] sm:$0xf]
  %v326 = vld [vmem:[%s3 + $0x1c] sm:$0xf]
  %v327 = vld [vmem:[%s3 + $0x20] sm:$0xf]
  %v328 = vld [vmem:[%s3 + $0x24] sm:$0xf]
  %v329 = vld [vmem:[%s3 + $0x28] sm:$0xf]
  %v330 = vld [vmem:[%s3 + $0x2c] sm:$0xf]
  %v331 = vld [vmem:[%s3 + $0x30] sm:$0xf]
  %v332 = vld [vmem:[%s3 + $0x34] sm:$0xf]
  %v333 = vld [vmem:[%s3 + $0x38] sm:$0xf]
  %v334 = vld [vmem:[%s3 + $0x3c] sm:$0xf]
  %v351 = vunpack.c.l.b16 %v319
  %v352 = vunpack.c.l.b16 %v320
  %v353 = vunpack.c.l.b16 %v321
  %v354 = vunpack.c.l.b16 %v322
  %v355 = vunpack.c.l.b16 %v323
  %v356 = vunpack.c.l.b16 %v324
  %v357 = vunpack.c.l.b16 %v325
  %v358 = vunpack.c.l.b16 %v326
  %v359 = vunpack.c.l.b16 %v327
  %v360 = vunpack.c.l.b16 %v328
  %v361 = vunpack.c.l.b16 %v329
  %v362 = vunpack.c.l.b16 %v330
  %v363 = vunpack.c.l.b16 %v331
  %v364 = vunpack.c.l.b16 %v332
  %v365 = vunpack.c.l.b16 %v333
  %v366 = vunpack.c.l.b16 %v334
  %v367 = vpack.c.b16 %v352, %v351
  %v368 = vpack.c.b16 %v354, %v353
  %v369 = vpack.c.b16 %v356, %v355
  %v370 = vpack.c.b16 %v358, %v357
  %v371 = vpack.c.b16 %v360, %v359
  %v372 = vpack.c.b16 %v362, %v361
  %v373 = vpack.c.b16 %v364, %v363
  %v374 = vpack.c.b16 %v366, %v365
  %383 = vmatprep.subr.bf16.mxu0 0
  %384 = vmatpush1.bf16.msra.mxu0 %v374
  %385 = vmatprep.subr.bf16.mxu0 0
  %386 = vmatpush1.bf16.msra.mxu0 %v373
  %387 = vmatprep.subr.bf16.mxu0 0
  %388 = vmatpush1.bf16.msra.mxu0 %v372
  %389 = vmatprep.subr.bf16.mxu0 0
  %390 = vmatpush1.bf16.msra.mxu0 %v371
  %391 = vmatprep.subr.bf16.mxu0 0
  %392 = vmatpush1.bf16.msra.mxu0 %v370
  %393 = vmatprep.subr.bf16.mxu0 0
  %394 = vmatpush1.bf16.msra.mxu0 %v369
  %395 = vmatprep.subr.bf16.mxu0 0
  %396 = vmatpush1.bf16.msra.mxu0 %v368
  %397 = vmatprep.subr.bf16.mxu0 0
  %398 = vmatpush1.bf16.msra.mxu0 %v367
  %399 = vmatprep.subr.bf16.mxu0 0
  %400 = vmatpush2.bf16.msra.mxu0 0
  %401 = vmatprep.subr.bf16.mxu0 0
  %402 = vmatpush2.bf16.msra.mxu0 0
  %403 = vmatprep.subr.bf16.mxu0 0
  %404 = vmatpush2.bf16.msra.mxu0 0
  %405 = vmatprep.subr.bf16.mxu0 0
  %406 = vmatpush2.bf16.msra.mxu0 0
  %407 = vmatprep.subr.bf16.mxu0 0
  %408 = vmatpush2.bf16.msra.mxu0 0
  %409 = vmatprep.subr.bf16.mxu0 0
  %410 = vmatpush2.bf16.msra.mxu0 0
  %411 = vmatprep.subr.bf16.mxu0 0
  %412 = vmatpush2.bf16.msra.mxu0 0
  %413 = vmatprep.subr.bf16.mxu0 0
  %414 = vmatpush2.bf16.msra.mxu0 0
  %415 = vmatprep.mubr.bf16.mxu0 0
  %416 = vmatmul.mubr.bf16.gmra.mxu0 %v318
  %v417 = vpop.f32.mrf.mxu0
  %v418 = vadd.f32 0.0, %v417
  %v419 = vpop.f32.mrf.mxu0
  %v420 = vpop.f32.mrf.mxu0
  %v421 = vadd.f32 0.0, %v420
  %v422 = vpop.f32.mrf.mxu0
  %423 = vdwg.mxu0
  %s424 = scalar_lea.vmem %s3, 64
  %v425 = vld [vmem:[%s424] sm:$0xf]
  %v426 = vld [vmem:[%s424 + $0x4] sm:$0xf]
  %v427 = vld [vmem:[%s424 + $0x8] sm:$0xf]
  %v428 = vld [vmem:[%s424 + $0xc] sm:$0xf]
  %v429 = vld [vmem:[%s424 + $0x10] sm:$0xf]
  %v430 = vld [vmem:[%s424 + $0x14] sm:$0xf]
  %v431 = vld [vmem:[%s424 + $0x18] sm:$0xf]
  %v432 = vld [vmem:[%s424 + $0x1c] sm:$0xf]
  %v433 = vld [vmem:[%s424 + $0x20] sm:$0xf]
  %v434 = vld [vmem:[%s424 + $0x24] sm:$0xf]
  %v435 = vld [vmem:[%s424 + $0x28] sm:$0xf]
  %v436 = vld [vmem:[%s424 + $0x2c] sm:$0xf]
  %v437 = vld [vmem:[%s424 + $0x30] sm:$0xf]
  %v438 = vld [vmem:[%s424 + $0x34] sm:$0xf]
  %v439 = vld [vmem:[%s424 + $0x38] sm:$0xf]
  %v440 = vld [vmem:[%s424 + $0x3c] sm:$0xf]
  %s441 = scalar_lea.vmem %s3, 128
  %v442 = vld [vmem:[%s441] sm:$0xf]
  %v443 = vld [vmem:[%s441 + $0x4] sm:$0xf]
  %v444 = vld [vmem:[%s441 + $0x8] sm:$0xf]
  %v445 = vld [vmem:[%s441 + $0xc] sm:$0xf]
  %v446 = vld [vmem:[%s441 + $0x10] sm:$0xf]
  %v447 = vld [vmem:[%s441 + $0x14] sm:$0xf]
  %v448 = vld [vmem:[%s441 + $0x18] sm:$0xf]
  %v449 = vld [vmem:[%s441 + $0x1c] sm:$0xf]
  %v450 = vld [vmem:[%s441 + $0x20] sm:$0xf]
  %v451 = vld [vmem:[%s441 + $0x24] sm:$0xf]
  %v452 = vld [vmem:[%s441 + $0x28] sm:$0xf]
  %v453 = vld [vmem:[%s441 + $0x2c] sm:$0xf]
  %v454 = vld [vmem:[%s441 + $0x30] sm:$0xf]
  %v455 = vld [vmem:[%s441 + $0x34] sm:$0xf]
  %v456 = vld [vmem:[%s441 + $0x38] sm:$0xf]
  %v457 = vld [vmem:[%s441 + $0x3c] sm:$0xf]
  %v474 = vunpack.c.l.b16 %v442
  %v475 = vunpack.c.l.b16 %v443
  %v476 = vunpack.c.l.b16 %v444
  %v477 = vunpack.c.l.b16 %v445
  %v478 = vunpack.c.l.b16 %v446
  %v479 = vunpack.c.l.b16 %v447
  %v480 = vunpack.c.l.b16 %v448
  %v481 = vunpack.c.l.b16 %v449
  %v482 = vunpack.c.l.b16 %v450
  %v483 = vunpack.c.l.b16 %v451
  %v484 = vunpack.c.l.b16 %v452
  %v485 = vunpack.c.l.b16 %v453
  %v486 = vunpack.c.l.b16 %v454
  %v487 = vunpack.c.l.b16 %v455
  %v488 = vunpack.c.l.b16 %v456
  %v489 = vunpack.c.l.b16 %v457
  %v490 = vpack.c.b16 %v475, %v474
  %v491 = vpack.c.b16 %v477, %v476
  %v492 = vpack.c.b16 %v479, %v478
  %v493 = vpack.c.b16 %v481, %v480
  %v494 = vpack.c.b16 %v483, %v482
  %v495 = vpack.c.b16 %v485, %v484
  %v496 = vpack.c.b16 %v487, %v486
  %v497 = vpack.c.b16 %v489, %v488
  %506 = vmatprep.subr.bf16.mxu0 0
  %507 = vmatpush1.bf16.msra.mxu0 %v497
  %508 = vmatprep.subr.bf16.mxu0 0
  %509 = vmatpush1.bf16.msra.mxu0 %v496
  %510 = vmatprep.subr.bf16.mxu0 0
  %511 = vmatpush1.bf16.msra.mxu0 %v495
  %512 = vmatprep.subr.bf16.mxu0 0
  %513 = vmatpush1.bf16.msra.mxu0 %v494
  %514 = vmatprep.subr.bf16.mxu0 0
  %515 = vmatpush1.bf16.msra.mxu0 %v493
  %516 = vmatprep.subr.bf16.mxu0 0
  %517 = vmatpush1.bf16.msra.mxu0 %v492
  %518 = vmatprep.subr.bf16.mxu0 0
  %519 = vmatpush1.bf16.msra.mxu0 %v491
  %520 = vmatprep.subr.bf16.mxu0 0
  %521 = vmatpush1.bf16.msra.mxu0 %v490
  %522 = vmatprep.subr.bf16.mxu0 0
  %523 = vmatpush2.bf16.msra.mxu0 0
  %524 = vmatprep.subr.bf16.mxu0 0
  %525 = vmatpush2.bf16.msra.mxu0 0
  %526 = vmatprep.subr.bf16.mxu0 0
  %527 = vmatpush2.bf16.msra.mxu0 0
  %528 = vmatprep.subr.bf16.mxu0 0
  %529 = vmatpush2.bf16.msra.mxu0 0
  %530 = vmatprep.subr.bf16.mxu0 0
  %531 = vmatpush2.bf16.msra.mxu0 0
  %532 = vmatprep.subr.bf16.mxu0 0
  %533 = vmatpush2.bf16.msra.mxu0 0
  %534 = vmatprep.subr.bf16.mxu0 0
  %535 = vmatpush2.bf16.msra.mxu0 0
  %536 = vmatprep.subr.bf16.mxu0 0
  %537 = vmatpush2.bf16.msra.mxu0 0
  %538 = vmatprep.mubr.bf16.mxu0 0
  %539 = vmatmul.mubr.bf16.gmra.mxu0 %v318
  %v540 = vpop.f32.mrf.mxu0
  %v541 = vadd.f32 0.0, %v540
  %v542 = vpop.f32.mrf.mxu0
  %v543 = vpop.f32.mrf.mxu0
  %v544 = vadd.f32 0.0, %v543
  %v545 = vpop.f32.mrf.mxu0
  %546 = vdwg.mxu0
  %v547 = vrot.slane %v418, 7
  %v548 = vrot.slane %v421, 7
  %v549 = vsel %vm220, %v547, %v548
  %v550 = vsel %vm220, %v548, %v547
  %v551 = vsel %vm225, %v550, 0.0
  %v552 = vsel %vm226, %v549, 0.0
  %v553 = vrot.slane %v541, 1
  %v554 = vrot.slane %v544, 1
  %v555 = vsel %vm231, %v553, %v554
  %v556 = vsel %vm231, %v554, %v553
  %v557 = vsel %vm236, %v555, 0.0
  %v558 = vsel %vm237, %v556, 0.0
  %v575 = vunpack.c.l.b16 %v425
  %v576 = vunpack.c.l.b16 %v426
  %v577 = vunpack.c.l.b16 %v427
  %v578 = vunpack.c.l.b16 %v428
  %v579 = vunpack.c.l.b16 %v429
  %v580 = vunpack.c.l.b16 %v430
  %v581 = vunpack.c.l.b16 %v431
  %v582 = vunpack.c.l.b16 %v432
  %v583 = vunpack.c.l.b16 %v433
  %v584 = vunpack.c.l.b16 %v434
  %v585 = vunpack.c.l.b16 %v435
  %v586 = vunpack.c.l.b16 %v436
  %v587 = vunpack.c.l.b16 %v437
  %v588 = vunpack.c.l.b16 %v438
  %v589 = vunpack.c.l.b16 %v439
  %v590 = vunpack.c.l.b16 %v440
  %v591 = vpack.c.b16 %v576, %v575
  %v592 = vpack.c.b16 %v578, %v577
  %v593 = vpack.c.b16 %v580, %v579
  %v594 = vpack.c.b16 %v582, %v581
  %v595 = vpack.c.b16 %v584, %v583
  %v596 = vpack.c.b16 %v586, %v585
  %v597 = vpack.c.b16 %v588, %v587
  %v598 = vpack.c.b16 %v590, %v589
  %607 = vmatprep.subr.bf16.mxu0 0
  %608 = vmatpush1.bf16.msra.mxu0 %v598
  %609 = vmatprep.subr.bf16.mxu0 0
  %610 = vmatpush1.bf16.msra.mxu0 %v597
  %611 = vmatprep.subr.bf16.mxu0 0
  %612 = vmatpush1.bf16.msra.mxu0 %v596
  %613 = vmatprep.subr.bf16.mxu0 0
  %614 = vmatpush1.bf16.msra.mxu0 %v595
  %615 = vmatprep.subr.bf16.mxu0 0
  %616 = vmatpush1.bf16.msra.mxu0 %v594
  %617 = vmatprep.subr.bf16.mxu0 0
  %618 = vmatpush1.bf16.msra.mxu0 %v593
  %619 = vmatprep.subr.bf16.mxu0 0
  %620 = vmatpush1.bf16.msra.mxu0 %v592
  %621 = vmatprep.subr.bf16.mxu0 0
  %622 = vmatpush1.bf16.msra.mxu0 %v591
  %623 = vmatprep.subr.bf16.mxu0 0
  %624 = vmatpush2.bf16.msra.mxu0 0
  %625 = vmatprep.subr.bf16.mxu0 0
  %626 = vmatpush2.bf16.msra.mxu0 0
  %627 = vmatprep.subr.bf16.mxu0 0
  %628 = vmatpush2.bf16.msra.mxu0 0
  %629 = vmatprep.subr.bf16.mxu0 0
  %630 = vmatpush2.bf16.msra.mxu0 0
  %631 = vmatprep.subr.bf16.mxu0 0
  %632 = vmatpush2.bf16.msra.mxu0 0
  %633 = vmatprep.subr.bf16.mxu0 0
  %634 = vmatpush2.bf16.msra.mxu0 0
  %635 = vmatprep.subr.bf16.mxu0 0
  %636 = vmatpush2.bf16.msra.mxu0 0
  %637 = vmatprep.subr.bf16.mxu0 0
  %638 = vmatpush2.bf16.msra.mxu0 0
  %639 = vmatprep.mubr.bf16.mxu0 0
  %640 = vmatmul.mubr.bf16.gmra.mxu0 %v318
  %v641 = vpop.f32.mrf.mxu0
  %v642 = vadd.f32 %v551, %v641
  %v643 = vpop.f32.mrf.mxu0
  %v644 = vpop.f32.mrf.mxu0
  %v645 = vadd.f32 %v552, %v644
  %v646 = vpop.f32.mrf.mxu0
  %647 = vdwg.mxu0
  %v648 = vadd.f32 %v642, %v557
  %v649 = vadd.f32 %v645, %v558
  %v650 = vld [vmem:[%s4] sm:$0x1]
  %v652 = vlaneseq
  %v653 = vshrl.u32 %v652, 7
  %v654 = vsub.s32 0, %v653
  %v655 = vrot.slane %v650, %v654
  %v657 = vadd.f32 %v648, %v655
  %v658 = vadd.f32 %v649, %v655
  %v659 = vmax.f32 %v657, 0.0
  %v660 = vmax.f32 %v658, 0.0
  %661 = vst [vmem:[%s5] sm:$0xff] %v659
  %662 = vst [vmem:[%s5 + $0x8] sm:$0xff] %v660
  // Predicated region
  $region22: #{down_pallas.1} parent=0 // pred_check
    _
  $region23: #{down_pallas.1} parent=0 // pred_check_branch
    %664 = sbr.rel (0) target = $region25
  $region24: #{down_pallas.1} parent=0 // pred_region
    _
  $region25: #{down_pallas.1} parent=0 // pred_fallthru
    _
  // Predicated region
  $region26: #{down_pallas.1} parent=0 // pred_check
    _
  $region27: #{down_pallas.1} parent=0 // pred_check_branch
    %666 = sbr.rel (0) target = $region29
  $region28: #{down_pallas.1} parent=0 // pred_region
    _
  $region29: #{down_pallas.1} parent=0 // pred_fallthru
    _

</llo_original>
